<compile_context>
chip_gen: v7x
topology: tpu7x:2x2x1
jax: 0.10.0
libtpu: 0.0.40
codegen_flags: <defaults>
</compile_context>

<pallas_src>
import functools
import math

import jax
import jax.numpy as jnp
from jax.experimental import pallas as pl
from jax.experimental.pallas import tpu as pltpu


# --------------------------------------------------------------------------------------
# PE table (torch-equivalent buffer)
# --------------------------------------------------------------------------------------

def _build_pe_table(d_model: int, max_len: int) -> jnp.ndarray:
    """Sinusoidal positional-encoding buffer, shape (1, max_len, d_model), f32."""
    position = jnp.arange(max_len, dtype=jnp.float32)[:, None]             # (max_len, 1)
    div_term = jnp.exp(
        jnp.arange(0, d_model, 2, dtype=jnp.float32) * (-math.log(10000.0) / d_model)
    )                                                                       # (d_model//2,)
    pe = jnp.zeros((max_len, d_model), dtype=jnp.float32)
    pe = pe.at[:, 0::2].set(jnp.sin(position * div_term))
    pe = pe.at[:, 1::2].set(jnp.cos(position * div_term))
    return pe[None, :, :]                                                   # (1, max_len, d_model)


# --------------------------------------------------------------------------------------
# Kernels
# --------------------------------------------------------------------------------------

def _dropout_from_bits(y, bits, dropout_p):
    # P(drop) = dropout_p exact to 2^-32 via an integer threshold compare on raw bits.
    threshold = min(int(round(dropout_p * 4294967296.0)), 4294967295)
    keep = bits >= jnp.uint32(threshold)
    scale = jnp.float32(1.0 / (1.0 - dropout_p))        # inverted dropout
    return jnp.where(keep, y * scale, jnp.zeros_like(y))


def _pos_enc_eval_kernel(x_ref, pe_ref, o_ref):
    # x: (Bt, Rt, L), pe: (1, Rt, L) broadcast over batch. f32 math, single cast at store.
    y = x_ref[...].astype(jnp.float32) + pe_ref[...].astype(jnp.float32)
    o_ref[...] = y.astype(o_ref.dtype)


def _pos_enc_train_kernel(seed_ref, x_ref, pe_ref, o_ref, *, dropout_p):
    y = x_ref[...].astype(jnp.float32) + pe_ref[...].astype(jnp.float32)
    # Multi-word seed (base, seq-tile, batch-tile): no stream collisions across grid
    # steps, and no collisions across calls that merely increment `seed` by 1.
    pltpu.prng_seed(seed_ref[0], pl.program_id(0), pl.program_id(1))
    # TODO(synk): if a v7x profile shows the PRNG as the limiting filler, draw
    # (Bt, Rt, L//2) words and run the keep-test on both 16-bit halves instead.
    bits = pltpu.prng_random_bits(y.shape)
    if bits.dtype != jnp.uint32:                        # reinterpret i32 bits as u32
        bits = pltpu.bitcast(bits, jnp.uint32)
    o_ref[...] = _dropout_from_bits(y, bits, dropout_p).astype(o_ref.dtype)


def _pos_enc_train_hostbits_kernel(x_ref, pe_ref, bits_ref, o_ref, *, dropout_p):
    # Portable dropout path: random bits come from the JAX PRNG outside the kernel and
    # stream in as a third input (used on backends without the Mosaic hardware PRNG).
    y = x_ref[...].astype(jnp.float32) + pe_ref[...].astype(jnp.float32)
    o_ref[...] = _dropout_from_bits(y, bits_ref[...], dropout_p).astype(o_ref.dtype)


# --------------------------------------------------------------------------------------
# Tiling / launch helpers
# --------------------------------------------------------------------------------------

_TARGET_BLOCK_BYTES = 4 * 1024 * 1024     # ~4 MiB blocks: <10% per-step overhead on v7x,
                                          # <5% on v6e/v5e; 2x(x)+2x(out)+2x(pe) <= 24 MiB.
_MIN_BLOCK_BYTES = 512 * 1024             # never shrink blocks below this to manufacture steps
_LANE_CANDIDATES = (2048, 1024, 512, 256, 128)

_LOWERING_ERRORS = (NotImplementedError,
                    getattr(pltpu, "LoweringException", NotImplementedError))


def _lane_dense_geometry(seq_len: int, d_model: int):
    """Collapse (S, D) -> (R, L) with L a multiple of 128; returns (R, L, pad_elems)."""
    total = seq_len * d_model
    pad = (-total) % 128
    padded = total + pad
    lane = 128
    for cand in _LANE_CANDIDATES:
        if padded % cand == 0:
            lane = cand
            break
    return padded // lane, lane, pad


@functools.lru_cache(maxsize=None)
def _vmem_limit_bytes() -> int:
    # Raise the scoped-VMEM limit above the 16/32 MiB defaults so ~4 MiB blocks can be
    # double-buffered; keep ~25% headroom under physical VMEM
    # (v7x: 64 MiB -> 48 MiB, v5e/v6e: 128 MiB -> 96 MiB).
    try:
        cap = int(pltpu.get_tpu_info().vmem_capacity_bytes)
    except Exception:
        cap = 64 * 1024 * 1024            # conservative: assume v7x
    return min(96 * 1024 * 1024, (cap * 3) // 4)


def _choose_tiles(B, R, L, itemsize, target_block_bytes):
    """Pick (batch_tile, row_tile) so blocks are ~target_block_bytes AND the grid has
    enough steps (>= 4 when the data allows) for DMA pipelining + v7x megacore."""
    row_bytes = R * L * itemsize
    total_bytes = B * row_bytes
    want_steps = int(min(4, max(1, total_bytes // _MIN_BLOCK_BYTES)))

    if row_bytes > target_block_bytes:
        # One batch element per block, tile the collapsed sequence axis (>= 2 steps).
        Rt = max(8, (target_block_bytes // (L * itemsize)) // 8 * 8)
        return 1, min(Rt, R)

    # Whole (R, L) plane fits: stack batch rows into one block.
    Rt = R
    Bt = max(1, min(B, target_block_bytes // max(row_bytes, 1)))
    if pl.cdiv(B, Bt) < want_steps:
        Bt = max(1, pl.cdiv(B, want_steps))
    if pl.cdiv(B, Bt) < want_steps and R >= 16:
        # Batch alone cannot produce enough steps: split the row axis as well.
        r_tiles = pl.cdiv(want_steps, pl.cdiv(B, Bt))
        Rt = max(8, (pl.cdiv(R, r_tiles) // 8) * 8)
        Rt = min(Rt, R)
    return Bt, Rt


def _pos_enc_pallas(x, pe, *, dropout_p, training, seed,
                    target_block_bytes=_TARGET_BLOCK_BYTES):
    """x: (B, R, L) lane-dense, pe: (1, R, L) in x.dtype. Returns (B, R, L)."""
    B, R, L = x.shape
    Bt, Rt = _choose_tiles(B, R, L, x.dtype.itemsize, target_block_bytes)
    # seq tiles OUTER, batch tiles INNER: PE's block index is constant over the inner
    # axis, so it is not re-fetched while sweeping the batch.
    grid = (pl.cdiv(R, Rt), pl.cdiv(B, Bt))

    # TODO(synk): optionally sweep pipeline_mode=pl.Buffered(3) on x once profiles show
    # exposed input DMA at the top of each (now shorter) step.
    x_spec = pl.BlockSpec((Bt, Rt, L), lambda r, b, *_: (b, r, 0))
    # TODO(synk): pipeline_mode=pl.Buffered(1) on PE would drop its second VMEM buffer;
    # left at the default because 4 MiB blocks already fit well under the raised VMEM
    # limit and single-buffer pipeline_mode support varies across Pallas versions.
    pe_spec = pl.BlockSpec((1, Rt, L), lambda r, b, *_: (0, r, 0))

    out_shape = jax.ShapeDtypeStruct((B, R, L), x.dtype)
    cparams = pltpu.CompilerParams(
        dimension_semantics=("parallel", "parallel"),   # lets v7x's 2 TCs split the grid
        vmem_limit_bytes=_vmem_limit_bytes())

    use_dropout = bool(training) and dropout_p > 0.0

    if not use_dropout:
        call = pl.pallas_call(
            _pos_enc_eval_kernel,
            out_shape=out_shape,
            grid_spec=pltpu.PrefetchScalarGridSpec(
                num_scalar_prefetch=0, grid=grid,
                in_specs=[x_spec, pe_spec], out_specs=x_spec),
            compiler_params=cparams)
        return call(x, pe)

    if jax.default_backend() == "tpu":
        kernel = functools.partial(_pos_enc_train_kernel, dropout_p=float(dropout_p))
        call = pl.pallas_call(
            kernel,
            out_shape=out_shape,
            grid_spec=pltpu.PrefetchScalarGridSpec(
                num_scalar_prefetch=1, grid=grid,
                in_specs=[x_spec, pe_spec], out_specs=x_spec),
            compiler_params=cparams)
        try:
            return call(jnp.asarray([seed], dtype=jnp.int32), x, pe)
        except _LOWERING_ERRORS:
            pass   # emulated / interpret backends without the Mosaic PRNG: fall through

    # Portable fallback: JAX-PRNG bits streamed in as an extra input.
    bits = jax.random.bits(jax.random.PRNGKey(int(seed)), (B, R, L), dtype=jnp.uint32)
    kernel = functools.partial(_pos_enc_train_hostbits_kernel, dropout_p=float(dropout_p))
    call = pl.pallas_call(
        kernel,
        out_shape=out_shape,
        grid_spec=pltpu.PrefetchScalarGridSpec(
            num_scalar_prefetch=0, grid=grid,
            in_specs=[x_spec, pe_spec, x_spec], out_specs=x_spec),
        compiler_params=cparams)
    return call(x, pe, bits)


# --------------------------------------------------------------------------------------
# Module wrapper (mirrors the PyTorch nn.Module)
# --------------------------------------------------------------------------------------

class PositionalEncoding:
    """Pallas-TPU port of the PyTorch PositionalEncoding module."""

    def __init__(self, d_model: int, dropout: float = 0.1, max_len: int = 5000):
        self.d_model = int(d_model)
        self.dropout_p = float(dropout)
        self.max_len = int(max_len)
        self.pe = _build_pe_table(self.d_model, self.max_len)   # (1, max_len, d_model) f32
        self._pe_cache = {}   # (seq_len, dtype name) -> lane-dense (1, R, L) slice

    def _pe_lane_dense(self, seq_len, dtype, R, L, pad):
        # Slice + cast + reshape of the PE buffer is done once per (seq_len, dtype)
        # instead of on every forward call (review: hoist PE prep out of the hot path).
        key = (seq_len, jnp.dtype(dtype).name)
        pe = self._pe_cache.get(key)
        if pe is None:
            pe_flat = self.pe[:, :seq_len, :].astype(dtype).reshape(1, seq_len * self.d_model)
            if pad:
                pe_flat = jnp.pad(pe_flat, ((0, 0), (0, pad)))
            pe = pe_flat.reshape(1, R, L)
            self._pe_cache[key] = pe
        return pe

    def __call__(self, x, *, training: bool = False, seed: int = 0):
        """x: (batch, seq_len, d_model). Returns x + pe[:, :seq_len, :], then dropout."""
        B, S, D = x.shape
        assert D == self.d_model, f"d_model mismatch: {D} vs {self.d_model}"
        assert S <= self.max_len, f"seq_len {S} exceeds max_len {self.max_len}"

        R, L, pad = _lane_dense_geometry(S, D)
        pe_r = self._pe_lane_dense(S, x.dtype, R, L, pad)

        x_flat = x.reshape(B, S * D)
        if pad:
            # Lane-sparse shapes: pad the flattened axis up to a multiple of 128 so the
            # kernel always stores full 128-wide lanes (no masked vst.msk).
            x_flat = jnp.pad(x_flat, ((0, 0), (0, pad)))
        x_r = x_flat.reshape(B, R, L)

        out = _pos_enc_pallas(x_r, pe_r, dropout_p=self.dropout_p,
                              training=training, seed=seed)

        if pad:
            out = out.reshape(B, R * L)[:, : S * D]
        return out.reshape(B, S, D)


# --------------------------------------------------------------------------------------
# Demo / self-test
# --------------------------------------------------------------------------------------

if __name__ == "__main__":
    d_model, max_len = 32, 5000
    batch, seq_len = 2, 8
    dropout_p = 0.1

    module = PositionalEncoding(d_model, dropout=dropout_p, max_len=max_len)

    key = jax.random.PRNGKey(0)
    x = jax.random.normal(key, (batch, seq_len, d_model), dtype=jnp.float32)

    ref = x + module.pe[:, :seq_len, :]

    # ---- eval mode (dropout = identity), matching module.eval() semantics ----
    out_eval = jax.block_until_ready(module(x, training=False))
    assert out_eval.shape == (batch, seq_len, d_model)
    assert jnp.allclose(out_eval, ref, atol=1e-6), "eval mismatch vs reference"

    # ---- training mode (inverted dropout) ----
    out_train = jax.block_until_ready(module(x, training=True, seed=1234))
    assert out_train.shape == (batch, seq_len, d_model)
    assert bool(jnp.all(jnp.isfinite(out_train)))
    kept = out_train != 0.0
    scale = 1.0 / (1.0 - dropout_p)
    assert bool(jnp.all(jnp.where(kept, jnp.abs(out_train - ref * scale), 0.0) < 1e-5)), \
        "kept elements do not match scaled reference"
    drop_frac = 1.0 - float(jnp.mean(kept.astype(jnp.float32)))
    assert 0.0 <= drop_frac <= 0.35, f"unexpected drop fraction {drop_frac}"

    print("KERNEL_OK")
</pallas_src>

<mosaic_0001>
module attributes {stable_mosaic.version = 11 : i64} {
  func.func @_pos_enc_eval_kernel(%arg0: i32, %arg1: i32, %arg2: memref<2x1x256xf32, #tpu.memory_space<vmem>>, %arg3: memref<1x1x256xf32, #tpu.memory_space<vmem>>, %arg4: memref<2x1x256xf32, #tpu.memory_space<vmem>>) attributes {dimension_semantics = [#tpu.dimension_semantics<parallel>, #tpu.dimension_semantics<parallel>], iteration_bounds = array<i64: 1, 1>, scalar_prefetch = 0 : i64, scratch_operands = 0 : i64, tpu.core_type = #tpu.core_type<tc>, window_params = [{transform_indices = @transform_0, window_bounds = array<i64: 2, 1, 256>}, {transform_indices = @transform_1, window_bounds = array<i64: 1, 1, 256>}, {transform_indices = @transform_2, window_bounds = array<i64: 2, 1, 256>}]} {
    %c0 = arith.constant 0 : index
    %c0_0 = arith.constant 0 : index
    %c0_1 = arith.constant 0 : index
    %0 = vector.load %arg2[%c0, %c0_0, %c0_1] : memref<2x1x256xf32, #tpu.memory_space<vmem>>, vector<2x1x256xf32>
    %c0_2 = arith.constant 0 : index
    %c0_3 = arith.constant 0 : index
    %c0_4 = arith.constant 0 : index
    %1 = vector.load %arg3[%c0_2, %c0_3, %c0_4] : memref<1x1x256xf32, #tpu.memory_space<vmem>>, vector<1x1x256xf32>
    %2 = vector.broadcast %1 : vector<1x1x256xf32> to vector<2x1x256xf32>
    %3 = arith.addf %0, %2 : vector<2x1x256xf32>
    %c0_5 = arith.constant 0 : index
    %c0_6 = arith.constant 0 : index
    %c0_7 = arith.constant 0 : index
    %4 = vector.load %arg4[%c0_5, %c0_6, %c0_7] : memref<2x1x256xf32, #tpu.memory_space<vmem>>, vector<2x1x256xf32>
    tpu.vector_store %arg4[%c0_5, %c0_6, %c0_7], %3 {strides = array<i32>} : memref<2x1x256xf32, #tpu.memory_space<vmem>>, vector<2x1x256xf32>,
    return
  }
  func.func @transform_0(%arg0: i32, %arg1: i32) -> (i32, i32, i32) {
    %c0_i32 = arith.constant 0 : i32
    %c0_i32_0 = arith.constant 0 : i32
    return %arg1, %arg0, %c0_i32 : i32, i32, i32
  }
  func.func @transform_1(%arg0: i32, %arg1: i32) -> (i32, i32, i32) {
    %c0_i32 = arith.constant 0 : i32
    %c0_i32_0 = arith.constant 0 : i32
    %c0_i32_1 = arith.constant 0 : i32
    return %c0_i32, %arg0, %c0_i32_0 : i32, i32, i32
  }
  func.func @transform_2(%arg0: i32, %arg1: i32) -> (i32, i32, i32) {
    %c0_i32 = arith.constant 0 : i32
    %c0_i32_0 = arith.constant 0 : i32
    return %arg1, %arg0, %c0_i32 : i32, i32, i32
  }
}

</mosaic_0001>

<llo_original>
// kernel: tpu_custom_call.1
$region0: #{tpu_custom_call.1}
  #allocation0 [shape = 'u32[]', space=smem, size = 0x4, offset = 0x4, fixed_abs, tag = 'smem constant byte address 0x4 - core index']
  #allocation1 [shape = 'u32[144,128]{1,0:T(1,128)}', space=vmem, size = 0x12000, scoped, tag = 'internal scratch']
  %s0 = inlined_call_operand.hbm [shape: f32[2,1,256], index: 0, kind: input, shape index: {}]
  %s1 = inlined_call_operand.vmem [shape: f32[1,1,256], index: 1, kind: input, shape index: {}]
  %s2 = inlined_call_operand.hbm [shape: f32[2,1,256], index: 2, kind: output, shape index: {}]
  %s3 = sld [smem:[#allocation0]]
  $region22: #{tpu_custom_call.1} parent=0
    _
  %s5 = ssub.s32 1, %s3
  %s6 = scalar_select 0, %s5, %s3
  $region1: #{tpu_custom_call.1} parent=0
    #allocation2 [shape = 'u8[2048]{0}', space=vmem, size = 0x800, scoped, tag = 'input window, operand 0, single buffered']
    #allocation3 [shape = 's32[1]{0}', space=sflag, size = 0x4, scoped, tag = 'scoped memory for tpu_custom_call.1']
    #allocation4 [shape = 's32[1]{0}', space=sflag, size = 0x4, scoped, tag = 'scoped memory for tpu_custom_call.1']
    #allocation5 [shape = 'u8[2048]{0}', space=vmem, size = 0x800, scoped, tag = 'output window, operand 0, single buffered']
    %7 = vsyncpa [#allocation3], 0
    %8 = vsyncpa [#allocation4], 0
    // Predicated region
    $region2: #{tpu_custom_call.1} parent=1 // pred_check
      _
    $region3: #{tpu_custom_call.1} parent=1 // pred_check_branch
      %10 = sbr.rel (0) target = $region5
    $region4: #{tpu_custom_call.1} parent=1 // pred_region
      %s12 = ssub.s32 64, 64
      %13 = vsyncadd [#allocation3], %s12
      %s14 = sshll.u32 [#allocation2], 4
      %s15 = int_to_ptr.vmem [resolvable:$true] %s14
      %20 = dma.hbm_to_vmem [thread:$0]  %s0, 64, %s15, [#allocation3], 32, 32, 2
    $region5: #{tpu_custom_call.1} parent=1 // pred_fallthru
      _
    // Predicated region
    $region6: #{tpu_custom_call.1} parent=1 // pred_check
      _
    $region7: #{tpu_custom_call.1} parent=1 // pred_check_branch
      %22 = sbr.rel (0) target = $region9
    $region8: #{tpu_custom_call.1} parent=1 // pred_region
      _
    $region9: #{tpu_custom_call.1} parent=1 // pred_fallthru
      _
    // Predicated region
    $region10: #{tpu_custom_call.1} parent=1 // pred_check
      _
    $region11: #{tpu_custom_call.1} parent=1 // pred_check_branch
      %24 = sbr.rel (0) target = $region13
    $region12: #{tpu_custom_call.1} parent=1 // pred_region
      %25 = dma.done [#allocation3], 64
    $region13: #{tpu_custom_call.1} parent=1 // pred_fallthru
      _
    %v26 = vld [vmem:[#allocation2] sm:$0x3]
    %v27 = vld [vmem:[#allocation2 + $0x2] sm:$0x3]
    %v28 = vld [vmem:[%s1] sm:$0x3]
    %v29 = vadd.f32 %v26, %v28
    %v30 = vadd.f32 %v27, %v28
    %v31 = vlaneseq
    %vm32 = vcmp.ge.s32.totalorder %v31, 0
    %vm33 = vcmp.lt.s32.totalorder %v31, 256
    %vm34 = vmand %vm32, %vm33
    %35 = vst.msk [vmem:[#allocation5] sm:$0x3] %vm34, %v29
    %36 = vst.msk [vmem:[#allocation5 + $0x2] sm:$0x3] %vm34, %v30
    // Predicated region
    $region14: #{tpu_custom_call.1} parent=1 // pred_check
      _
    $region15: #{tpu_custom_call.1} parent=1 // pred_check_branch
      %38 = sbr.rel (0) target = $region17
    $region16: #{tpu_custom_call.1} parent=1 // pred_region
      %s40 = ssub.s32 64, 64
      %41 = vsyncadd [#allocation4], %s40
      %s42 = sshll.u32 [#allocation5], 4
      %s43 = int_to_ptr.vmem [resolvable:$true] %s42
      %48 = dma.vmem_to_hbm [thread:$0]  %s43, 64, %s2, [#allocation4], 32, 32, 2
    $region17: #{tpu_custom_call.1} parent=1 // pred_fallthru
      _
    // Predicated region
    $region18: #{tpu_custom_call.1} parent=1 // pred_check
      _
    $region19: #{tpu_custom_call.1} parent=1 // pred_check_branch
      %50 = sbr.rel (0) target = $region21
    $region20: #{tpu_custom_call.1} parent=1 // pred_region
      %51 = dma.done [#allocation4], 64
    $region21: #{tpu_custom_call.1} parent=1 // pred_fallthru
      _
    %52 = vsyncpa [#allocation3], 1
    %53 = vsyncpa [#allocation4], 1

</llo_original>
